<compile_context>
chip_gen: v6e
topology: v6e:2x2x1
jax: 0.10.0
libtpu: 0.0.40
codegen_flags: <defaults>
</compile_context>

<pallas_src>
import math
import numpy as np

import jax
import jax.numpy as jnp
from jax.experimental import pallas as pl
from jax.experimental.pallas import tpu as pltpu


LANES = 128  # lane width of every batch tile


# ----------------------------------------------------------------------------
# Parameter init (mirrors SHBasis.__init__, no scipy / no files)
# ----------------------------------------------------------------------------
def _legendre_coeffs_ascending(l):
    # same values as scipy.special.legendre(l).c[::-1]  (ascending powers)
    c = np.zeros(l + 1, dtype=np.float64)
    c[l] = 1.0
    return np.polynomial.legendre.leg2poly(c)


def make_sh_basis_params(deg):
    l = int(deg)
    assert l >= 1, "SHBasis requires deg >= 1 (log(l) / lgamma(l+1) in init)"
    coeffs = [float(c) for c in _legendre_coeffs_ascending(l)]
    logcoeff = (-2.0 * math.log(l) - math.lgamma(l + 1)
                + 0.5 * (math.lgamma(2 * l + 2) - math.log(4.0 * math.pi)))
    return dict(
        deg=l,
        coeffs=coeffs,                                        # ascending powers
        y0_scale=math.sqrt((2 * l + 1) / 4.0 / math.pi),
        coeff=((-1.0) ** l) * math.exp(logcoeff),             # SHBasis.coeff
        al_num=l * (l + 1) / 2.0,
    )


# ----------------------------------------------------------------------------
# Shared elementwise math (used by the kernel body AND the XLA ragged tail)
# ----------------------------------------------------------------------------
def _pow_int(b, n):
    """b**n for static integer n >= 1 via square-and-multiply (trace-time unroll)."""
    r = None
    while n:
        if n & 1:
            r = b if r is None else r * b
        n >>= 1
        if n:
            b = b * b
    return r


def _sh_planes(theta, phi, kappa, p):
    """Returns (a*y0, a*Re(yl), a*Im(yl)) for the SHBasis forward pass."""
    l = p["deg"]
    cs = p["coeffs"]

    # a = Al(l, kappa): one divide + one EUP exp.
    a = jnp.exp(-p["al_num"] / (kappa + 1e-8))

    # y0 = sqrt((2l+1)/4pi) * P_l(cos(theta)); parity-aware Horner in t = cos^2.
    x = jnp.cos(theta)
    t = x * x
    d = cs[1::2] if (l % 2) else cs[0::2]        # only same-parity coeffs are nonzero
    v = jnp.full_like(x, d[-1])
    for ck in d[-2::-1]:
        v = v * t + ck
    if l % 2:
        v = v * x
    ay0 = a * (p["y0_scale"] * v)

    # sin(theta)^l: even l uses (1 - cos^2)^(l/2) -> no sin() EUP call needed.
    if l % 2 == 0:
        sl = _pow_int(1.0 - t, l // 2)
    else:
        s = jnp.sin(theta)
        sl = s if l == 1 else s * _pow_int(s * s, (l - 1) // 2)

    acsl = (p["coeff"] * a) * sl                 # fold a in once
    lphi = float(l) * phi
    return ay0, acsl * jnp.cos(lphi), acsl * jnp.sin(lphi)


# ----------------------------------------------------------------------------
# Pallas kernel
# ----------------------------------------------------------------------------
def _make_kernel(params):
    def kernel(theta_ref, phi_ref, kappa_ref, out_ref):
        # Full (block_rows, 128) vreg-dense tiles; three contiguous lane-dense
        # plane stores (no concatenate epilogue, unmasked vst).
        o0, o1, o2 = _sh_planes(theta_ref[...], phi_ref[...], kappa_ref[...], params)
        out_ref[0] = o0
        out_ref[1] = o1
        out_ref[2] = o2
    return kernel


def sh_basis_forward(theta, phi, kappa, params, *, block_rows=512,
                     layout="torch", core_parallel=False):
    """Pallas SHBasis forward.

    theta/phi/kappa: (B,) or (B, 1) float32.
    layout="torch"  -> (B, 3) [y0, Re(yl), Im(yl)]   (module-faithful, 1 transpose)
    layout="planar" -> (3, B)                        (zero-epilogue, preferred downstream)
    core_parallel=True: use pltpu.CORE_PARALLEL on the grid axis (v7x, 2 TCs/chip).
    """
    assert block_rows % 8 == 0, "block_rows must be a multiple of 8 (f32 sublanes)"
    assert layout in ("torch", "planar")
    theta = jnp.asarray(theta, jnp.float32).reshape(-1)
    phi = jnp.asarray(phi, jnp.float32).reshape(-1)
    kappa = jnp.asarray(kappa, jnp.float32).reshape(-1)
    B = theta.shape[0]

    block_elems = block_rows * LANES
    n_blocks = B // block_elems
    prefix = n_blocks * block_elems

    parts = []
    if n_blocks > 0:
        rows = n_blocks * block_rows
        in_spec = pl.BlockSpec((block_rows, LANES), lambda i: (i, 0))
        sem = (pltpu.CORE_PARALLEL,) if core_parallel else ("parallel",)
        cp_kwargs = {}
        # double-buffered VMEM estimate: 3 input tiles + 3 output planes, x2 buffers
        vmem_need = 2 * (3 + 3) * block_rows * LANES * 4
        if vmem_need > (24 << 20):
            cp_kwargs["vmem_limit_bytes"] = int(min(vmem_need + (8 << 20), 60 << 20))

        out3 = pl.pallas_call(
            _make_kernel(params),
            out_shape=jax.ShapeDtypeStruct((3, rows, LANES), jnp.float32),
            grid=(n_blocks,),
            in_specs=[in_spec, in_spec, in_spec],
            out_specs=pl.BlockSpec((3, block_rows, LANES), lambda i: (0, i, 0)),
            compiler_params=pltpu.CompilerParams(dimension_semantics=sem, **cp_kwargs),
        )(theta[:prefix].reshape(rows, LANES),
          phi[:prefix].reshape(rows, LANES),
          kappa[:prefix].reshape(rows, LANES))
        parts.append(out3.reshape(3, prefix))          # contiguous reshape, no copy

    if prefix < B:
        # Ragged tail (< block_rows*128 elems): plain XLA, avoids jnp.pad copies
        # of the whole input and keeps the Pallas grid full-block only.
        o0, o1, o2 = _sh_planes(theta[prefix:], phi[prefix:], kappa[prefix:], params)
        parts.append(jnp.stack([o0, o1, o2], axis=0))

    planar = parts[0] if len(parts) == 1 else jnp.concatenate(parts, axis=-1)  # (3, B)
    if layout == "planar":
        return planar
    return planar.T  # (B, 3); prefer layout="planar" downstream to skip this transpose


# ----------------------------------------------------------------------------
# Pure-JAX literal reference (direct port of the PyTorch math, for validation)
# ----------------------------------------------------------------------------
def sh_basis_reference(theta, phi, kappa, params):
    l = params["deg"]
    theta = jnp.asarray(theta, jnp.float32)
    phi = jnp.asarray(phi, jnp.float32)
    kappa = jnp.asarray(kappa, jnp.float32)
    a = jnp.exp(-l * (l + 1) / 2.0 / (kappa + 1e-8))
    x = jnp.cos(theta)
    coeffs = jnp.asarray(params["coeffs"], jnp.float32)
    xpow = x[..., None] ** jnp.arange(len(params["coeffs"]))
    v = (xpow * coeffs).sum(axis=-1)
    y0 = params["y0_scale"] * v
    sl = jnp.sin(theta) ** l
    yl1 = params["coeff"] * sl * jnp.cos(l * phi)
    yl2 = params["coeff"] * sl * jnp.sin(l * phi)
    return a * jnp.concatenate([y0, yl1, yl2], axis=-1)     # (B, 3)


# ----------------------------------------------------------------------------
if __name__ == "__main__":
    B = 2000
    key = jax.random.PRNGKey(0)
    k1, k2, k3 = jax.random.split(key, 3)
    theta = jax.random.uniform(k1, (B, 1), jnp.float32, minval=0.0, maxval=math.pi)
    phi = jax.random.uniform(k2, (B, 1), jnp.float32, minval=-math.pi, maxval=math.pi)
    kappa = jax.random.uniform(k3, (B, 1), jnp.float32, minval=0.5, maxval=64.0)

    # small block_rows here so BOTH the Pallas full-block prefix and the XLA
    # ragged tail are exercised at this small B (production default is 512).
    for deg in (1, 2, 4, 9):     # odd/even parity, short/long Horner & power chains
        params = make_sh_basis_params(deg)
        ref = np.asarray(jax.block_until_ready(sh_basis_reference(theta, phi, kappa, params)))
        out = np.asarray(jax.block_until_ready(
            sh_basis_forward(theta, phi, kappa, params, block_rows=8)))
        assert out.shape == (B, 3), out.shape
        np.testing.assert_allclose(out, ref, rtol=1e-3, atol=1e-4)

    # zero-epilogue planar layout
    params = make_sh_basis_params(4)
    planar = np.asarray(jax.block_until_ready(
        sh_basis_forward(theta, phi, kappa, params, block_rows=8, layout="planar")))
    assert planar.shape == (3, B)
    np.testing.assert_allclose(
        planar.T, np.asarray(sh_basis_reference(theta, phi, kappa, params)),
        rtol=1e-3, atol=1e-4)

    # exactly block-aligned batch: Pallas-only path, no tail, no concatenate
    Ba = 1024
    out_a = np.asarray(jax.block_until_ready(
        sh_basis_forward(theta[:Ba], phi[:Ba], kappa[:Ba], params, block_rows=8)))
    np.testing.assert_allclose(
        out_a, np.asarray(sh_basis_reference(theta[:Ba], phi[:Ba], kappa[:Ba], params)),
        rtol=1e-3, atol=1e-4)

    print("KERNEL_OK")
</pallas_src>

<mosaic_0001>
module attributes {stable_mosaic.version = 11 : i64} {
  func.func @kernel(%arg0: i32, %arg1: memref<8x128xf32, #tpu.memory_space<vmem>>, %arg2: memref<8x128xf32, #tpu.memory_space<vmem>>, %arg3: memref<8x128xf32, #tpu.memory_space<vmem>>, %arg4: memref<3x8x128xf32, #tpu.memory_space<vmem>>) attributes {dimension_semantics = [#tpu.dimension_semantics<parallel>], iteration_bounds = array<i64: 1>, scalar_prefetch = 0 : i64, scratch_operands = 0 : i64, tpu.core_type = #tpu.core_type<tc>, window_params = [{transform_indices = @transform_0, window_bounds = array<i64: 8, 128>}, {transform_indices = @transform_1, window_bounds = array<i64: 8, 128>}, {transform_indices = @transform_2, window_bounds = array<i64: 8, 128>}, {transform_indices = @transform_3, window_bounds = array<i64: 3, 8, 128>}]} {
    %c0 = arith.constant 0 : index
    %c0_0 = arith.constant 0 : index
    %0 = vector.load %arg1[%c0, %c0_0] : memref<8x128xf32, #tpu.memory_space<vmem>>, vector<8x128xf32>
    %c0_1 = arith.constant 0 : index
    %c0_2 = arith.constant 0 : index
    %1 = vector.load %arg2[%c0_1, %c0_2] : memref<8x128xf32, #tpu.memory_space<vmem>>, vector<8x128xf32>
    %c0_3 = arith.constant 0 : index
    %c0_4 = arith.constant 0 : index
    %2 = vector.load %arg3[%c0_3, %c0_4] : memref<8x128xf32, #tpu.memory_space<vmem>>, vector<8x128xf32>
    %cst = arith.constant 9.99999993E-9 : f32
    %3 = vector.broadcast %cst : f32 to vector<8x128xf32>
    %4 = arith.addf %2, %3 : vector<8x128xf32>
    %cst_5 = arith.constant -1.000000e+00 : f32
    %5 = vector.broadcast %cst_5 : f32 to vector<8x128xf32>
    %6 = arith.divf %5, %4 : vector<8x128xf32>
    %7 = math.exp %6 : vector<8x128xf32>
    %8 = math.cos %0 : vector<8x128xf32>
    %cst_6 = arith.constant 1.000000e+00 : f32
    %9 = vector.broadcast %cst_6 : f32 to vector<8x128xf32>
    %10 = arith.mulf %9, %8 : vector<8x128xf32>
    %cst_7 = arith.constant 0.488602519 : f32
    %11 = vector.broadcast %cst_7 : f32 to vector<8x128xf32>
    %12 = arith.mulf %11, %10 : vector<8x128xf32>
    %13 = arith.mulf %7, %12 : vector<8x128xf32>
    %14 = math.sin %0 : vector<8x128xf32>
    %cst_8 = arith.constant -0.690988302 : f32
    %15 = vector.broadcast %cst_8 : f32 to vector<8x128xf32>
    %16 = arith.mulf %15, %7 : vector<8x128xf32>
    %17 = arith.mulf %16, %14 : vector<8x128xf32>
    %cst_9 = arith.constant 1.000000e+00 : f32
    %18 = vector.broadcast %cst_9 : f32 to vector<8x128xf32>
    %19 = arith.mulf %18, %1 : vector<8x128xf32>
    %20 = math.cos %19 : vector<8x128xf32>
    %21 = arith.mulf %17, %20 : vector<8x128xf32>
    %22 = math.sin %19 : vector<8x128xf32>
    %23 = arith.mulf %17, %22 : vector<8x128xf32>
    %c0_10 = arith.constant 0 : index
    %c0_11 = arith.constant 0 : index
    %c0_12 = arith.constant 0 : index
    %24 = vector.load %arg4[%c0_10, %c0_11, %c0_12] : memref<3x8x128xf32, #tpu.memory_space<vmem>>, vector<1x8x128xf32>
    %25 = vector.shape_cast %24 : vector<1x8x128xf32> to vector<8x128xf32>
    %26 = vector.shape_cast %13 : vector<8x128xf32> to vector<1x8x128xf32>
    tpu.vector_store %arg4[%c0_10, %c0_11, %c0_12], %26 {strides = array<i32>} : memref<3x8x128xf32, #tpu.memory_space<vmem>>, vector<1x8x128xf32>,
    %c1 = arith.constant 1 : index
    %c0_13 = arith.constant 0 : index
    %c0_14 = arith.constant 0 : index
    %27 = vector.load %arg4[%c1, %c0_13, %c0_14] : memref<3x8x128xf32, #tpu.memory_space<vmem>>, vector<1x8x128xf32>
    %28 = vector.shape_cast %27 : vector<1x8x128xf32> to vector<8x128xf32>
    %29 = vector.shape_cast %21 : vector<8x128xf32> to vector<1x8x128xf32>
    tpu.vector_store %arg4[%c1, %c0_13, %c0_14], %29 {strides = array<i32>} : memref<3x8x128xf32, #tpu.memory_space<vmem>>, vector<1x8x128xf32>,
    %c2 = arith.constant 2 : index
    %c0_15 = arith.constant 0 : index
    %c0_16 = arith.constant 0 : index
    %30 = vector.load %arg4[%c2, %c0_15, %c0_16] : memref<3x8x128xf32, #tpu.memory_space<vmem>>, vector<1x8x128xf32>
    %31 = vector.shape_cast %30 : vector<1x8x128xf32> to vector<8x128xf32>
    %32 = vector.shape_cast %23 : vector<8x128xf32> to vector<1x8x128xf32>
    tpu.vector_store %arg4[%c2, %c0_15, %c0_16], %32 {strides = array<i32>} : memref<3x8x128xf32, #tpu.memory_space<vmem>>, vector<1x8x128xf32>,
    return
  }
  func.func @transform_0(%arg0: i32) -> (i32, i32) {
    %c0_i32 = arith.constant 0 : i32
    %c0_i32_0 = arith.constant 0 : i32
    return %arg0, %c0_i32 : i32, i32
  }
  func.func @transform_1(%arg0: i32) -> (i32, i32) {
    %c0_i32 = arith.constant 0 : i32
    %c0_i32_0 = arith.constant 0 : i32
    return %arg0, %c0_i32 : i32, i32
  }
  func.func @transform_2(%arg0: i32) -> (i32, i32) {
    %c0_i32 = arith.constant 0 : i32
    %c0_i32_0 = arith.constant 0 : i32
    return %arg0, %c0_i32 : i32, i32
  }
  func.func @transform_3(%arg0: i32) -> (i32, i32, i32) {
    %c0_i32 = arith.constant 0 : i32
    %c0_i32_0 = arith.constant 0 : i32
    %c0_i32_1 = arith.constant 0 : i32
    return %c0_i32, %arg0, %c0_i32_0 : i32, i32, i32
  }
}

</mosaic_0001>

<llo_original>
// kernel: tpu_custom_call.1
$region0: #{tpu_custom_call.1}
  #allocation0 [shape = 'u32[]', space=smem, size = 0x4, offset = 0x4, fixed_abs, tag = 'smem constant byte address 0x4 - core index']
  #allocation1 [shape = 'u32[144,128]{1,0:T(1,128)}', space=vmem, size = 0x12000, scoped, tag = 'internal scratch']
  %s0 = inlined_call_operand.hbm [shape: f32[8,128], index: 0, kind: input, shape index: {}]
  %s1 = inlined_call_operand.hbm [shape: f32[8,128], index: 1, kind: input, shape index: {}]
  %s2 = inlined_call_operand.hbm [shape: f32[8,128], index: 2, kind: input, shape index: {}]
  %s3 = inlined_call_operand.hbm [shape: f32[3,8,128], index: 3, kind: output, shape index: {}]
  %s4 = sld [smem:[#allocation0]]
  $region34: #{tpu_custom_call.1} parent=0
    _
  %s6 = ssub.s32 1, %s4
  %s7 = scalar_select 0, %s6, %s4
  $region1: #{tpu_custom_call.1} parent=0
    #allocation2 [shape = 'u8[4096]{0}', space=vmem, size = 0x1000, scoped, tag = 'input window, operand 0, single buffered']
    #allocation3 [shape = 's32[1]{0}', space=sflag, size = 0x4, scoped, tag = 'scoped memory for tpu_custom_call.1']
    #allocation4 [shape = 's32[1]{0}', space=sflag, size = 0x4, scoped, tag = 'scoped memory for tpu_custom_call.1']
    #allocation5 [shape = 'u8[4096]{0}', space=vmem, size = 0x1000, scoped, tag = 'input window, operand 1, single buffered']
    #allocation6 [shape = 's32[1]{0}', space=sflag, size = 0x4, scoped, tag = 'scoped memory for tpu_custom_call.1']
    #allocation7 [shape = 'u8[4096]{0}', space=vmem, size = 0x1000, scoped, tag = 'input window, operand 2, single buffered']
    #allocation8 [shape = 'u8[12288]{0}', space=vmem, size = 0x3000, scoped, tag = 'output window, operand 0, single buffered']
    %8 = vsyncpa [#allocation3], 0
    %9 = vsyncpa [#allocation6], 0
    %10 = vsyncpa [#allocation4], 0
    // Predicated region
    $region2: #{tpu_custom_call.1} parent=1 // pred_check
      _
    $region3: #{tpu_custom_call.1} parent=1 // pred_check_branch
      %12 = sbr.rel (0) target = $region5
    $region4: #{tpu_custom_call.1} parent=1 // pred_region
      %s14 = ssub.s32 128, 128
      %15 = vsyncadd [#allocation3], %s14
      %s17 = sshll.u32 [#allocation2], 4
      %s18 = int_to_ptr.vmem [resolvable:$true] %s17
      %20 = dma.hbm_to_vmem [thread:$0]  %s0, 128, %s18, [#allocation3]
    $region5: #{tpu_custom_call.1} parent=1 // pred_fallthru
      _
    // Predicated region
    $region6: #{tpu_custom_call.1} parent=1 // pred_check
      _
    $region7: #{tpu_custom_call.1} parent=1 // pred_check_branch
      %22 = sbr.rel (0) target = $region9
    $region8: #{tpu_custom_call.1} parent=1 // pred_region
      %s24 = ssub.s32 128, 128
      %25 = vsyncadd [#allocation6], %s24
      %s27 = sshll.u32 [#allocation5], 4
      %s28 = int_to_ptr.vmem [resolvable:$true] %s27
      %30 = dma.hbm_to_vmem [thread:$0]  %s1, 128, %s28, [#allocation6]
    $region9: #{tpu_custom_call.1} parent=1 // pred_fallthru
      _
    // Predicated region
    $region10: #{tpu_custom_call.1} parent=1 // pred_check
      _
    $region11: #{tpu_custom_call.1} parent=1 // pred_check_branch
      %32 = sbr.rel (0) target = $region13
    $region12: #{tpu_custom_call.1} parent=1 // pred_region
      %s34 = ssub.s32 128, 128
      %35 = vsyncadd [#allocation6], %s34
      %s37 = sshll.u32 [#allocation7], 4
      %s38 = int_to_ptr.vmem [resolvable:$true] %s37
      %40 = dma.hbm_to_vmem [thread:$0]  %s2, 128, %s38, [#allocation6]
    $region13: #{tpu_custom_call.1} parent=1 // pred_fallthru
      _
    // Predicated region
    $region14: #{tpu_custom_call.1} parent=1 // pred_check
      _
    $region15: #{tpu_custom_call.1} parent=1 // pred_check_branch
      %42 = sbr.rel (0) target = $region17
    $region16: #{tpu_custom_call.1} parent=1 // pred_region
      %43 = dma.done [#allocation3], 128
    $region17: #{tpu_custom_call.1} parent=1 // pred_fallthru
      _
    // Predicated region
    $region18: #{tpu_custom_call.1} parent=1 // pred_check
      _
    $region19: #{tpu_custom_call.1} parent=1 // pred_check_branch
      %45 = sbr.rel (0) target = $region21
    $region20: #{tpu_custom_call.1} parent=1 // pred_region
      %46 = dma.done [#allocation6], 128
    $region21: #{tpu_custom_call.1} parent=1 // pred_fallthru
      _
    // Predicated region
    $region22: #{tpu_custom_call.1} parent=1 // pred_check
      _
    $region23: #{tpu_custom_call.1} parent=1 // pred_check_branch
      %48 = sbr.rel (0) target = $region25
    $region24: #{tpu_custom_call.1} parent=1 // pred_region
      %49 = dma.done [#allocation6], 128
    $region25: #{tpu_custom_call.1} parent=1 // pred_fallthru
      _
    %v50 = vld [vmem:[#allocation2] sm:$0xff]
    %v51 = vld [vmem:[#allocation5] sm:$0xff]
    %v52 = vld [vmem:[#allocation7] sm:$0xff]
    %v53 = vadd.f32 %v52, 1e-08
    %v54 = vrcp.pop %v53
    %v55 = vmul.f32 -1.0, %v54
    %v56 = vmul.f32 %v55, 1.442695
    %v57 = vpow.pop %v56
    %v58 = vand.u32 2147483647, %v50
    %vm59 = vcmp.le.f32.partialorder %v58, 0.7853982
    %vm60 = vcmp.lt.s32.totalorder %v50, 0
    %v61 = vand.u32 %v50, 2139095040
    %v62 = vshrl.u32 %v61, 23
    %v63 = vsub.s32 %v62, 127
    %v64 = vand.u32 2147483647, %v50
    %v65 = vand.u32 %v64, 8388607
    %v66 = vor.u32 %v65, 8388608
    %v67 = vsub.s32 0, %v66
    %v68 = vadd.s32 %v63, 1
    %vm69 = vcmp.gt.s32.totalorder %v68, 0
    %v70 = vsel %vm69, %v68, 0
    %v71 = vshrl.u32 %v70, 5
    %v72 = vand.u32 %v70, 31
    %v73 = vsub.s32 32, %v72
    %v74 = vshrl.u32 683565275, %v73
    %v75 = vshll.u32 683565275, %v72
    %v76 = vshrl.u32 2475754826, %v73
    %v77 = vor.u32 %v75, %v76
    %v78 = vshll.u32 2475754826, %v72
    %v79 = vshrl.u32 2131351028, %v73
    %v80 = vor.u32 %v78, %v79
    %v81 = vshll.u32 2131351028, %v72
    %v82 = vshrl.u32 2102212464, %v73
    %v83 = vor.u32 %v81, %v82
    %v84 = vshll.u32 2102212464, %v72
    %v85 = vshrl.u32 920167782, %v73
    %v86 = vor.u32 %v84, %v85
    %v87 = vshll.u32 920167782, %v72
    %v88 = vshrl.u32 1326507024, %v73
    %v89 = vor.u32 %v87, %v88
    %vm90 = vcmp.lt.s32.totalorder %v71, 1
    %vm91 = vcmp.lt.s32.totalorder %v71, 2
    %vm92 = vcmp.lt.s32.totalorder %v71, 3
    %vm93 = vcmp.lt.s32.totalorder %v71, 4
    %v94 = vsel %vm90, %v74, %v77
    %v95 = vsel %vm93, %v83, 2102212464
    %v96 = vsel %vm92, %v80, %v95
    %v97 = vsel %vm91, %v94, %v96
    %v98 = vsel %vm90, %v77, %v80
    %v99 = vsel %vm93, %v86, 920167782
    %v100 = vsel %vm92, %v83, %v99
    %v101 = vsel %vm91, %v98, %v100
    %v102 = vsel %vm90, %v80, %v83
    %v103 = vsel %vm93, %v89, 1326507024
    %v104 = vsel %vm92, %v86, %v103
    %v105 = vsel %vm91, %v102, %v104
    %v106 = vshll.u32 %v66, 8
    %v107 = vmul.u32.u64.compose %v106, %v105
    %v108 = vextract.low.u32 %v107
    %v109 = vextract.high.u32 %v107
    %v110 = vmul.u32.u64.compose %v106, %v101
    %v111 = vextract.low.u32 %v110
    %v112 = vextract.high.u32 %v110
    %v113 = vmul.u32 %v106, %v97
    %v114 = vadd.s32 %v109, %v111
    %vm115 = vc.u32 %v109, %v111
    %v116 = vadd.s32 %v112, 1
    %v117 = vsel %vm115, %v116, %v112
    %v118 = vadd.s32 %v113, %v117
    %v119 = vadd.s32 %v118, 536870912
    %v120 = vshrl.u32 %v119, 30
    %v121 = vshll.u32 %v120, 30
    %v122 = vsub.s32 %v118, %v121
    %vm123 = vcmp.lt.s32.totalorder %v122, 0
    %v124 = vsub.s32 0, %v122
    %v125 = vsel %vm123, %v124, %v122
    %v126 = vclz %v125
    %v127 = vsub.s32 %v126, 2
    %vm128 = vcmp.gt.s32.totalorder 0, %v127
    %v129 = vsel %vm128, 0, %v127
    %v130 = vsub.s32 32, %v129
    %v131 = vshll.u32 %v122, %v129
    %v132 = vshrl.u32 %v114, %v130
    %v133 = vor.u32 %v131, %v132
    %v134 = vsub.s32 4294967266, %v129
    %v135 = vadd.s32 %v134, 127
    %v136 = vshll.u32 %v135, 23
    %v137 = vor.u32 4788187, %v136
    %v138 = vand.u32 2147483647, %v137
    %v140 = vcvt.s32.f32 %v133
    %v141 = vmul.f32 %v140, %v138
    %v142 = vxor.u32 %v141, 2147483648
    %v143 = vsel %vm60, %v142, %v141
    %v144 = vsub.s32 4, %v120
    %v145 = vsel %vm60, %v144, %v120
    %v146 = vsel %vm59, %v50, %v143
    %v147 = vsel %vm59, 0, %v145
    %v148 = vcosq.f32.pop %v146
    %v149 = vsinq.f32.pop %v146
    %vm150 = vweird.f32 %v50
    %v151 = vand.u32 %v147, 3
    %vm152 = vcmp.lt.s32.totalorder %v151, 2
    %vm153 = vcmp.eq.s32.totalorder %v151, 0
    %v154 = vxor.u32 %v149, 2147483648
    %v155 = vsel %vm153, %v148, %v154
    %vm156 = vcmp.eq.s32.totalorder %v151, 2
    %v157 = vxor.u32 %v148, 2147483648
    %v158 = vsel %vm156, %v157, %v149
    %v159 = vsel %vm152, %v155, %v158
    %v160 = vsel %vm150, nan, %v159
    %v161 = vmul.f32 %v160, 0.48860252
    %v162 = vmul.f32 %v57, %v161
    %v163 = vand.u32 2147483647, %v50
    %vm164 = vcmp.le.f32.partialorder %v163, 0.7853982
    %vm165 = vcmp.lt.s32.totalorder %v50, 0
    %v166 = vand.u32 %v50, 2139095040
    %v167 = vshrl.u32 %v166, 23
    %v168 = vsub.s32 %v167, 127
    %v169 = vand.u32 2147483647, %v50
    %v170 = vand.u32 %v169, 8388607
    %v171 = vor.u32 %v170, 8388608
    %v172 = vsub.s32 0, %v171
    %v173 = vadd.s32 %v168, 1
    %vm174 = vcmp.gt.s32.totalorder %v173, 0
    %v175 = vsel %vm174, %v173, 0
    %v176 = vshrl.u32 %v175, 5
    %v177 = vand.u32 %v175, 31
    %v178 = vsub.s32 32, %v177
    %v179 = vshrl.u32 683565275, %v178
    %v180 = vshll.u32 683565275, %v177
    %v181 = vshrl.u32 2475754826, %v178
    %v182 = vor.u32 %v180, %v181
    %v183 = vshll.u32 2475754826, %v177
    %v184 = vshrl.u32 2131351028, %v178
    %v185 = vor.u32 %v183, %v184
    %v186 = vshll.u32 2131351028, %v177
    %v187 = vshrl.u32 2102212464, %v178
    %v188 = vor.u32 %v186, %v187
    %v189 = vshll.u32 2102212464, %v177
    %v190 = vshrl.u32 920167782, %v178
    %v191 = vor.u32 %v189, %v190
    %v192 = vshll.u32 920167782, %v177
    %v193 = vshrl.u32 1326507024, %v178
    %v194 = vor.u32 %v192, %v193
    %vm195 = vcmp.lt.s32.totalorder %v176, 1
    %vm196 = vcmp.lt.s32.totalorder %v176, 2
    %vm197 = vcmp.lt.s32.totalorder %v176, 3
    %vm198 = vcmp.lt.s32.totalorder %v176, 4
    %v199 = vsel %vm195, %v179, %v182
    %v200 = vsel %vm198, %v188, 2102212464
    %v201 = vsel %vm197, %v185, %v200
    %v202 = vsel %vm196, %v199, %v201
    %v203 = vsel %vm195, %v182, %v185
    %v204 = vsel %vm198, %v191, 920167782
    %v205 = vsel %vm197, %v188, %v204
    %v206 = vsel %vm196, %v203, %v205
    %v207 = vsel %vm195, %v185, %v188
    %v208 = vsel %vm198, %v194, 1326507024
    %v209 = vsel %vm197, %v191, %v208
    %v210 = vsel %vm196, %v207, %v209
    %v211 = vshll.u32 %v171, 8
    %v212 = vmul.u32.u64.compose %v211, %v210
    %v213 = vextract.low.u32 %v212
    %v214 = vextract.high.u32 %v212
    %v215 = vmul.u32.u64.compose %v211, %v206
    %v216 = vextract.low.u32 %v215
    %v217 = vextract.high.u32 %v215
    %v218 = vmul.u32 %v211, %v202
    %v219 = vadd.s32 %v214, %v216
    %vm220 = vc.u32 %v214, %v216
    %v221 = vadd.s32 %v217, 1
    %v222 = vsel %vm220, %v221, %v217
    %v223 = vadd.s32 %v218, %v222
    %v224 = vadd.s32 %v223, 536870912
    %v225 = vshrl.u32 %v224, 30
    %v226 = vshll.u32 %v225, 30
    %v227 = vsub.s32 %v223, %v226
    %vm228 = vcmp.lt.s32.totalorder %v227, 0
    %v229 = vsub.s32 0, %v227
    %v230 = vsel %vm228, %v229, %v227
    %v231 = vclz %v230
    %v232 = vsub.s32 %v231, 2
    %vm233 = vcmp.gt.s32.totalorder 0, %v232
    %v234 = vsel %vm233, 0, %v232
    %v235 = vsub.s32 32, %v234
    %v236 = vshll.u32 %v227, %v234
    %v237 = vshrl.u32 %v219, %v235
    %v238 = vor.u32 %v236, %v237
    %v239 = vsub.s32 4294967266, %v234
    %v240 = vadd.s32 %v239, 127
    %v241 = vshll.u32 %v240, 23
    %v242 = vor.u32 4788187, %v241
    %v243 = vand.u32 2147483647, %v242
    %v245 = vcvt.s32.f32 %v238
    %v246 = vmul.f32 %v245, %v243
    %v247 = vxor.u32 %v246, 2147483648
    %v248 = vsel %vm165, %v247, %v246
    %v249 = vsub.s32 4, %v225
    %v250 = vsel %vm165, %v249, %v225
    %v251 = vsel %vm164, %v50, %v248
    %v252 = vsel %vm164, 0, %v250
    %v253 = vcosq.f32.pop %v251
    %v254 = vsinq.f32.pop %v251
    %vm255 = vweird.f32 %v50
    %v256 = vadd.s32 %v252, 3
    %v257 = vand.u32 %v256, 3
    %vm258 = vcmp.lt.s32.totalorder %v257, 2
    %vm259 = vcmp.eq.s32.totalorder %v257, 0
    %v260 = vxor.u32 %v254, 2147483648
    %v261 = vsel %vm259, %v253, %v260
    %vm262 = vcmp.eq.s32.totalorder %v257, 2
    %v263 = vxor.u32 %v253, 2147483648
    %v264 = vsel %vm262, %v263, %v254
    %v265 = vsel %vm258, %v261, %v264
    %v266 = vsel %vm255, nan, %v265
    %v267 = vmul.f32 %v57, -0.6909883
    %v268 = vmul.f32 %v267, %v266
    %v269 = vand.u32 2147483647, %v51
    %vm270 = vcmp.le.f32.partialorder %v269, 0.7853982
    %vm271 = vcmp.lt.s32.totalorder %v51, 0
    %v272 = vand.u32 %v51, 2139095040
    %v273 = vshrl.u32 %v272, 23
    %v274 = vsub.s32 %v273, 127
    %v275 = vand.u32 2147483647, %v51
    %v276 = vand.u32 %v275, 8388607
    %v277 = vor.u32 %v276, 8388608
    %v278 = vsub.s32 0, %v277
    %v279 = vadd.s32 %v274, 1
    %vm280 = vcmp.gt.s32.totalorder %v279, 0
    %v281 = vsel %vm280, %v279, 0
    %v282 = vshrl.u32 %v281, 5
    %v283 = vand.u32 %v281, 31
    %v284 = vsub.s32 32, %v283
    %v285 = vshrl.u32 683565275, %v284
    %v286 = vshll.u32 683565275, %v283
    %v287 = vshrl.u32 2475754826, %v284
    %v288 = vor.u32 %v286, %v287
    %v289 = vshll.u32 2475754826, %v283
    %v290 = vshrl.u32 2131351028, %v284
    %v291 = vor.u32 %v289, %v290
    %v292 = vshll.u32 2131351028, %v283
    %v293 = vshrl.u32 2102212464, %v284
    %v294 = vor.u32 %v292, %v293
    %v295 = vshll.u32 2102212464, %v283
    %v296 = vshrl.u32 920167782, %v284
    %v297 = vor.u32 %v295, %v296
    %v298 = vshll.u32 920167782, %v283
    %v299 = vshrl.u32 1326507024, %v284
    %v300 = vor.u32 %v298, %v299
    %vm301 = vcmp.lt.s32.totalorder %v282, 1
    %vm302 = vcmp.lt.s32.totalorder %v282, 2
    %vm303 = vcmp.lt.s32.totalorder %v282, 3
    %vm304 = vcmp.lt.s32.totalorder %v282, 4
    %v305 = vsel %vm301, %v285, %v288
    %v306 = vsel %vm304, %v294, 2102212464
    %v307 = vsel %vm303, %v291, %v306
    %v308 = vsel %vm302, %v305, %v307
    %v309 = vsel %vm301, %v288, %v291
    %v310 = vsel %vm304, %v297, 920167782
    %v311 = vsel %vm303, %v294, %v310
    %v312 = vsel %vm302, %v309, %v311
    %v313 = vsel %vm301, %v291, %v294
    %v314 = vsel %vm304, %v300, 1326507024
    %v315 = vsel %vm303, %v297, %v314
    %v316 = vsel %vm302, %v313, %v315
    %v317 = vshll.u32 %v277, 8
    %v318 = vmul.u32.u64.compose %v317, %v316
    %v319 = vextract.low.u32 %v318
    %v320 = vextract.high.u32 %v318
    %v321 = vmul.u32.u64.compose %v317, %v312
    %v322 = vextract.low.u32 %v321
    %v323 = vextract.high.u32 %v321
    %v324 = vmul.u32 %v317, %v308
    %v325 = vadd.s32 %v320, %v322
    %vm326 = vc.u32 %v320, %v322
    %v327 = vadd.s32 %v323, 1
    %v328 = vsel %vm326, %v327, %v323
    %v329 = vadd.s32 %v324, %v328
    %v330 = vadd.s32 %v329, 536870912
    %v331 = vshrl.u32 %v330, 30
    %v332 = vshll.u32 %v331, 30
    %v333 = vsub.s32 %v329, %v332
    %vm334 = vcmp.lt.s32.totalorder %v333, 0
    %v335 = vsub.s32 0, %v333
    %v336 = vsel %vm334, %v335, %v333
    %v337 = vclz %v336
    %v338 = vsub.s32 %v337, 2
    %vm339 = vcmp.gt.s32.totalorder 0, %v338
    %v340 = vsel %vm339, 0, %v338
    %v341 = vsub.s32 32, %v340
    %v342 = vshll.u32 %v333, %v340
    %v343 = vshrl.u32 %v325, %v341
    %v344 = vor.u32 %v342, %v343
    %v345 = vsub.s32 4294967266, %v340
    %v346 = vadd.s32 %v345, 127
    %v347 = vshll.u32 %v346, 23
    %v348 = vor.u32 4788187, %v347
    %v349 = vand.u32 2147483647, %v348
    %v351 = vcvt.s32.f32 %v344
    %v352 = vmul.f32 %v351, %v349
    %v353 = vxor.u32 %v352, 2147483648
    %v354 = vsel %vm271, %v353, %v352
    %v355 = vsub.s32 4, %v331
    %v356 = vsel %vm271, %v355, %v331
    %v357 = vsel %vm270, %v51, %v354
    %v358 = vsel %vm270, 0, %v356
    %v359 = vcosq.f32.pop %v357
    %v360 = vsinq.f32.pop %v357
    %vm361 = vweird.f32 %v51
    %v362 = vand.u32 %v358, 3
    %vm363 = vcmp.lt.s32.totalorder %v362, 2
    %vm364 = vcmp.eq.s32.totalorder %v362, 0
    %v365 = vxor.u32 %v360, 2147483648
    %v366 = vsel %vm364, %v359, %v365
    %vm367 = vcmp.eq.s32.totalorder %v362, 2
    %v368 = vxor.u32 %v359, 2147483648
    %v369 = vsel %vm367, %v368, %v360
    %v370 = vsel %vm363, %v366, %v369
    %v371 = vsel %vm361, nan, %v370
    %v372 = vmul.f32 %v268, %v371
    %v373 = vand.u32 2147483647, %v51
    %vm374 = vcmp.le.f32.partialorder %v373, 0.7853982
    %vm375 = vcmp.lt.s32.totalorder %v51, 0
    %v376 = vand.u32 %v51, 2139095040
    %v377 = vshrl.u32 %v376, 23
    %v378 = vsub.s32 %v377, 127
    %v379 = vand.u32 2147483647, %v51
    %v380 = vand.u32 %v379, 8388607
    %v381 = vor.u32 %v380, 8388608
    %v382 = vsub.s32 0, %v381
    %v383 = vadd.s32 %v378, 1
    %vm384 = vcmp.gt.s32.totalorder %v383, 0
    %v385 = vsel %vm384, %v383, 0
    %v386 = vshrl.u32 %v385, 5
    %v387 = vand.u32 %v385, 31
    %v388 = vsub.s32 32, %v387
    %v389 = vshrl.u32 683565275, %v388
    %v390 = vshll.u32 683565275, %v387
    %v391 = vshrl.u32 2475754826, %v388
    %v392 = vor.u32 %v390, %v391
    %v393 = vshll.u32 2475754826, %v387
    %v394 = vshrl.u32 2131351028, %v388
    %v395 = vor.u32 %v393, %v394
    %v396 = vshll.u32 2131351028, %v387
    %v397 = vshrl.u32 2102212464, %v388
    %v398 = vor.u32 %v396, %v397
    %v399 = vshll.u32 2102212464, %v387
    %v400 = vshrl.u32 920167782, %v388
    %v401 = vor.u32 %v399, %v400
    %v402 = vshll.u32 920167782, %v387
    %v403 = vshrl.u32 1326507024, %v388
    %v404 = vor.u32 %v402, %v403
    %vm405 = vcmp.lt.s32.totalorder %v386, 1
    %vm406 = vcmp.lt.s32.totalorder %v386, 2
    %vm407 = vcmp.lt.s32.totalorder %v386, 3
    %vm408 = vcmp.lt.s32.totalorder %v386, 4
    %v409 = vsel %vm405, %v389, %v392
    %v410 = vsel %vm408, %v398, 2102212464
    %v411 = vsel %vm407, %v395, %v410
    %v412 = vsel %vm406, %v409, %v411
    %v413 = vsel %vm405, %v392, %v395
    %v414 = vsel %vm408, %v401, 920167782
    %v415 = vsel %vm407, %v398, %v414
    %v416 = vsel %vm406, %v413, %v415
    %v417 = vsel %vm405, %v395, %v398
    %v418 = vsel %vm408, %v404, 1326507024
    %v419 = vsel %vm407, %v401, %v418
    %v420 = vsel %vm406, %v417, %v419
    %v421 = vshll.u32 %v381, 8
    %v422 = vmul.u32.u64.compose %v421, %v420
    %v423 = vextract.low.u32 %v422
    %v424 = vextract.high.u32 %v422
    %v425 = vmul.u32.u64.compose %v421, %v416
    %v426 = vextract.low.u32 %v425
    %v427 = vextract.high.u32 %v425
    %v428 = vmul.u32 %v421, %v412
    %v429 = vadd.s32 %v424, %v426
    %vm430 = vc.u32 %v424, %v426
    %v431 = vadd.s32 %v427, 1
    %v432 = vsel %vm430, %v431, %v427
    %v433 = vadd.s32 %v428, %v432
    %v434 = vadd.s32 %v433, 536870912
    %v435 = vshrl.u32 %v434, 30
    %v436 = vshll.u32 %v435, 30
    %v437 = vsub.s32 %v433, %v436
    %vm438 = vcmp.lt.s32.totalorder %v437, 0
    %v439 = vsub.s32 0, %v437
    %v440 = vsel %vm438, %v439, %v437
    %v441 = vclz %v440
    %v442 = vsub.s32 %v441, 2
    %vm443 = vcmp.gt.s32.totalorder 0, %v442
    %v444 = vsel %vm443, 0, %v442
    %v445 = vsub.s32 32, %v444
    %v446 = vshll.u32 %v437, %v444
    %v447 = vshrl.u32 %v429, %v445
    %v448 = vor.u32 %v446, %v447
    %v449 = vsub.s32 4294967266, %v444
    %v450 = vadd.s32 %v449, 127
    %v451 = vshll.u32 %v450, 23
    %v452 = vor.u32 4788187, %v451
    %v453 = vand.u32 2147483647, %v452
    %v455 = vcvt.s32.f32 %v448
    %v456 = vmul.f32 %v455, %v453
    %v457 = vxor.u32 %v456, 2147483648
    %v458 = vsel %vm375, %v457, %v456
    %v459 = vsub.s32 4, %v435
    %v460 = vsel %vm375, %v459, %v435
    %v461 = vsel %vm374, %v51, %v458
    %v462 = vsel %vm374, 0, %v460
    %v463 = vcosq.f32.pop %v461
    %v464 = vsinq.f32.pop %v461
    %vm465 = vweird.f32 %v51
    %v466 = vadd.s32 %v462, 3
    %v467 = vand.u32 %v466, 3
    %vm468 = vcmp.lt.s32.totalorder %v467, 2
    %vm469 = vcmp.eq.s32.totalorder %v467, 0
    %v470 = vxor.u32 %v464, 2147483648
    %v471 = vsel %vm469, %v463, %v470
    %vm472 = vcmp.eq.s32.totalorder %v467, 2
    %v473 = vxor.u32 %v463, 2147483648
    %v474 = vsel %vm472, %v473, %v464
    %v475 = vsel %vm468, %v471, %v474
    %v476 = vsel %vm465, nan, %v475
    %v477 = vmul.f32 %v268, %v476
    %478 = vst [vmem:[#allocation8] sm:$0xff] %v162
    %s479 = scalar_lea.vmem [#allocation8], 8
    %480 = vst [vmem:[%s479] sm:$0xff] %v372
    %s481 = scalar_lea.vmem [#allocation8], 16
    %482 = vst [vmem:[%s481] sm:$0xff] %v477
    // Predicated region
    $region26: #{tpu_custom_call.1} parent=1 // pred_check
      _
    $region27: #{tpu_custom_call.1} parent=1 // pred_check_branch
      %484 = sbr.rel (0) target = $region29
    $region28: #{tpu_custom_call.1} parent=1 // pred_region
      %s486 = ssub.s32 384, 384
      %487 = vsyncadd [#allocation4], %s486
      %s488 = sshll.u32 [#allocation8], 4
      %s489 = int_to_ptr.vmem [resolvable:$true] %s488
      %494 = dma.vmem_to_hbm [thread:$0]  %s489, 384, %s3, [#allocation4], 128, 128, 8
    $region29: #{tpu_custom_call.1} parent=1 // pred_fallthru
      _
    // Predicated region
    $region30: #{tpu_custom_call.1} parent=1 // pred_check
      _
    $region31: #{tpu_custom_call.1} parent=1 // pred_check_branch
      %496 = sbr.rel (0) target = $region33
    $region32: #{tpu_custom_call.1} parent=1 // pred_region
      %497 = dma.done [#allocation4], 384
    $region33: #{tpu_custom_call.1} parent=1 // pred_fallthru
      _
    %498 = vsyncpa [#allocation3], 1
    %499 = vsyncpa [#allocation6], 1
    %500 = vsyncpa [#allocation4], 1

</llo_original>
